<compile_context>
chip_gen: v5e
topology: v5e:2x2
jax: 0.10.0
libtpu: 0.0.40
codegen_flags: <defaults>
</compile_context>

<pallas_src>
import functools

import jax
import jax.numpy as jnp
from jax.experimental import pallas as pl
from jax.experimental.pallas import tpu as pltpu

D_PROJ = 64                       # projection MLP width (fixed by the module)
_VMEM_LIMIT = 32 * 1024 * 1024    # >= default scoped VMEM on v5e/v6e/v7x


def _energy_kernel(x_ref, w1_ref, b1_ref, w2_ref, e_ref):
    """Energies for one batch tile: ReLU(x @ w1 + b1) . w2  ->  (TB, S)."""
    x3 = x_ref[...]                                        # (TB, S, H) bf16
    tb, s, h = x3.shape
    # First projection on the MXU: bf16 inputs, f32 accumulation.
    hidden = jnp.dot(x3.reshape(tb * s, h), w1_ref[...],
                     preferred_element_type=jnp.float32)   # (TB*S, 64) f32
    hidden = jnp.maximum(hidden + b1_ref[...], 0.0)        # bias + ReLU (VPU)
    # Width-1 projection as VPU multiply + lane reduction (no N=1 MXU matmul);
    # energies come out lane-dense as (TB, S).  b2 is omitted: softmax is
    # shift-invariant so the scalar bias cannot change the output.
    e = jnp.sum(hidden.reshape(tb, s, D_PROJ) * w2_ref[...], axis=-1)
    e_ref[...] = e.astype(e_ref.dtype)


def _combine_kernel(e_full_ref, e_tile_ref, x_ref, out_ref, *, batch):
    """Batch-axis softmax + weighted sum over seq for one batch tile."""
    e_full = e_full_ref[...]                               # (B_pad, S) f32
    b_pad, s = e_full.shape
    if b_pad > batch:  # static: keep zero-padded batch rows out of the softmax
        rows = jax.lax.broadcasted_iota(jnp.int32, (b_pad, s), 0)
        e_full = jnp.where(rows < batch, e_full, jnp.float32(-1e30))
    # softmax over the BATCH axis (dim=-2 of the squeezed (B, S) energies).
    col_max = jnp.max(e_full, axis=0, keepdims=True)                 # (1, S)
    col_sum = jnp.sum(jnp.exp(e_full - col_max), axis=0, keepdims=True)
    wts = jnp.exp(e_tile_ref[...] - col_max) / col_sum               # (TB, S)
    # Weighted sum over the sequence axis, f32 accumulation.
    x3 = x_ref[...].astype(jnp.float32)                              # (TB, S, H)
    out_ref[...] = jnp.sum(x3 * wts[:, :, None], axis=1).astype(out_ref.dtype)


def attention_forward(x, w1, b1, w2, b2=None, *, block_b=256):
    """SASRec Attention forward.

    Args:
      x:  (B, S, H) input.
      w1: (H, 64)  first Linear weight (transposed vs torch.nn.Linear).
      b1: (1, 64) or (64,) first Linear bias.
      w2: (64, 1)  second Linear weight.
      b2: ignored — softmax shift-invariance makes it a no-op on the output.
      block_b: batch-tile size for the grid.
    Returns: (B, H) in x.dtype.
    """
    del b2
    batch, seq, hidden = x.shape
    out_dtype = x.dtype

    # bf16 storage / DMA for the big operands; small params stay f32.
    x_bf = x.astype(jnp.bfloat16)
    w1_bf = w1.astype(jnp.bfloat16)
    b1_f = b1.astype(jnp.float32).reshape(1, D_PROJ)
    w2_f = w2.astype(jnp.float32).reshape(1, D_PROJ)   # (64,1) -> (1,64)

    # Batch tiling (the only dimension we can tile: softmax couples the batch
    # axis globally, the reduction couples the seq axis per row).
    tb = min(block_b, batch)
    if tb < batch:
        tb = max(8, (tb // 8) * 8)       # sublane-aligned tiles when tiling
    nb = pl.cdiv(batch, tb)
    b_pad = nb * tb
    if b_pad != batch:
        x_bf = jnp.pad(x_bf, ((0, b_pad - batch), (0, 0), (0, 0)))

    compiler_params = pltpu.CompilerParams(
        dimension_semantics=("parallel",),
        vmem_limit_bytes=_VMEM_LIMIT,
    )

    # ---- pass 1: energies e(B_pad, S), lane-dense with S on lanes ----------
    flops_e = 2 * b_pad * seq * hidden * D_PROJ + 4 * b_pad * seq * D_PROJ
    bytes_e = (b_pad * seq * hidden * 2 + hidden * D_PROJ * 2
               + 2 * D_PROJ * 4 + b_pad * seq * 4)
    energies = pl.pallas_call(
        _energy_kernel,
        out_shape=jax.ShapeDtypeStruct((b_pad, seq), jnp.float32),
        grid_spec=pltpu.PrefetchScalarGridSpec(
            num_scalar_prefetch=0,
            grid=(nb,),
            in_specs=[
                pl.BlockSpec((tb, seq, hidden), lambda i: (i, 0, 0)),
                pl.BlockSpec((hidden, D_PROJ), lambda i: (0, 0)),
                pl.BlockSpec((1, D_PROJ), lambda i: (0, 0)),
                pl.BlockSpec((1, D_PROJ), lambda i: (0, 0)),
            ],
            out_specs=pl.BlockSpec((tb, seq), lambda i: (i, 0)),
        ),
        compiler_params=compiler_params,
        cost_estimate=pl.CostEstimate(
            flops=flops_e, transcendentals=0, bytes_accessed=bytes_e),
    )(x_bf, w1_bf, b1_f, w2_f)

    # ---- pass 2: batch-axis softmax + weighted sum over seq ----------------
    flops_c = 2 * b_pad * seq * hidden + 6 * b_pad * seq * nb
    bytes_c = (b_pad * seq * hidden * 2 + 2 * b_pad * seq * 4
               + b_pad * hidden * 4)
    out = pl.pallas_call(
        functools.partial(_combine_kernel, batch=batch),
        out_shape=jax.ShapeDtypeStruct((b_pad, hidden), out_dtype),
        grid_spec=pltpu.PrefetchScalarGridSpec(
            num_scalar_prefetch=0,
            grid=(nb,),
            in_specs=[
                pl.BlockSpec((b_pad, seq), lambda i: (0, 0)),      # all energies
                pl.BlockSpec((tb, seq), lambda i: (i, 0)),         # tile energies
                pl.BlockSpec((tb, seq, hidden), lambda i: (i, 0, 0)),
            ],
            out_specs=pl.BlockSpec((tb, hidden), lambda i: (i, 0)),
        ),
        compiler_params=compiler_params,
        cost_estimate=pl.CostEstimate(
            flops=flops_c, transcendentals=(nb + 1) * b_pad * seq,
            bytes_accessed=bytes_c),
    )(energies, energies, x_bf)

    return out[:batch]


def _reference(x, w1, b1, w2, b2):
    h = jnp.maximum(jnp.einsum("bsh,hd->bsd", x, w1) + b1[None], 0.0)
    e = (jnp.einsum("bsd,do->bso", h, w2) + b2[None])[..., 0]   # (B, S)
    w = jax.nn.softmax(e, axis=0)            # softmax over the batch axis
    return jnp.sum(x * w[..., None], axis=1)                    # (B, H)


if __name__ == "__main__":
    def _run_case(b, s, h, block_b, key):
        kx, k1, k2, k3, k4 = jax.random.split(key, 5)
        x = jax.random.normal(kx, (b, s, h), dtype=jnp.float32)
        w1 = jax.random.normal(k1, (h, D_PROJ), jnp.float32) / jnp.sqrt(h)
        b1 = jax.random.normal(k2, (1, D_PROJ), jnp.float32) * 0.01
        w2 = jax.random.normal(k3, (D_PROJ, 1), jnp.float32) / jnp.sqrt(D_PROJ)
        b2 = jax.random.normal(k4, (1, 1), jnp.float32) * 0.01

        out = jax.block_until_ready(
            attention_forward(x, w1, b1, w2, b2, block_b=block_b))

        # Reference uses the same bf16-rounded x / w1 the kernel consumes
        # (and includes b2, which softmax shift-invariance makes a no-op).
        xq = x.astype(jnp.bfloat16).astype(jnp.float32)
        w1q = w1.astype(jnp.bfloat16).astype(jnp.float32)
        ref = _reference(xq, w1q, b1, w2, b2)

        assert out.shape == (b, h)
        err = float(jnp.max(jnp.abs(out.astype(jnp.float32) - ref)))
        assert jnp.allclose(out.astype(jnp.float32), ref,
                            atol=2e-3, rtol=2e-3), err

    key = jax.random.PRNGKey(0)
    k_a, k_b = jax.random.split(key)
    _run_case(2, 8, 32, 256, k_a)    # small shapes, single batch tile
    _run_case(20, 16, 32, 8, k_b)    # multi-tile grid + batch padding / masking
    print("KERNEL_OK")
</pallas_src>

<mosaic_0001>
module attributes {stable_mosaic.version = 11 : i64} {
  func.func @_energy_kernel(%arg0: i32, %arg1: memref<2x8x32xbf16, #tpu.memory_space<vmem>>, %arg2: memref<32x64xbf16, #tpu.memory_space<vmem>>, %arg3: memref<1x64xf32, #tpu.memory_space<vmem>>, %arg4: memref<1x64xf32, #tpu.memory_space<vmem>>, %arg5: memref<2x8xf32, #tpu.memory_space<vmem>>) attributes {dimension_semantics = [#tpu.dimension_semantics<parallel>], iteration_bounds = array<i64: 1>, scalar_prefetch = 0 : i64, scratch_operands = 0 : i64, tpu.core_type = #tpu.core_type<tc>, window_params = [{transform_indices = @transform_0, window_bounds = array<i64: 2, 8, 32>}, {pipeline_mode = #tpu.pipeline_mode<synchronous>, transform_indices = @transform_1, window_bounds = array<i64: 32, 64>}, {pipeline_mode = #tpu.pipeline_mode<synchronous>, transform_indices = @transform_2, window_bounds = array<i64: 1, 64>}, {pipeline_mode = #tpu.pipeline_mode<synchronous>, transform_indices = @transform_3, window_bounds = array<i64: 1, 64>}, {transform_indices = @transform_4, window_bounds = array<i64: 2, 8>}]} {
    %c0 = arith.constant 0 : index
    %c0_0 = arith.constant 0 : index
    %c0_1 = arith.constant 0 : index
    %0 = vector.load %arg1[%c0, %c0_0, %c0_1] : memref<2x8x32xbf16, #tpu.memory_space<vmem>>, vector<2x8x32xbf16>
    %1 = vector.shape_cast %0 : vector<2x8x32xbf16> to vector<16x32xbf16>
    %c0_2 = arith.constant 0 : index
    %c0_3 = arith.constant 0 : index
    %2 = vector.load %arg2[%c0_2, %c0_3] : memref<32x64xbf16, #tpu.memory_space<vmem>>, vector<32x64xbf16>
    %cst = arith.constant dense<0.000000e+00> : vector<16x64xf32>
    %3 = tpu.matmul %1, %2, %cst {dimension_numbers = #tpu.dot_dimension_numbers<[1], [0], [0], [1], [0, 0, 1, 1], [], []>} : vector<16x32xbf16>, vector<32x64xbf16>, vector<16x64xf32> -> vector<16x64xf32>
    %c0_4 = arith.constant 0 : index
    %c0_5 = arith.constant 0 : index
    %4 = vector.load %arg3[%c0_4, %c0_5] : memref<1x64xf32, #tpu.memory_space<vmem>>, vector<1x64xf32>
    %5 = vector.broadcast %4 : vector<1x64xf32> to vector<16x64xf32>
    %6 = arith.addf %3, %5 : vector<16x64xf32>
    %cst_6 = arith.constant 0.000000e+00 : f32
    %7 = vector.broadcast %cst_6 : f32 to vector<16x64xf32>
    %8 = arith.maximumf %6, %7 : vector<16x64xf32>
    %9 = vector.shape_cast %8 : vector<16x64xf32> to vector<2x8x64xf32>
    %c0_7 = arith.constant 0 : index
    %c0_8 = arith.constant 0 : index
    %10 = vector.load %arg4[%c0_7, %c0_8] : memref<1x64xf32, #tpu.memory_space<vmem>>, vector<1x64xf32>
    %11 = vector.shape_cast %10 : vector<1x64xf32> to vector<1x1x64xf32>
    %12 = vector.broadcast %11 : vector<1x1x64xf32> to vector<2x8x64xf32>
    %13 = arith.mulf %9, %12 : vector<2x8x64xf32>
    %cst_9 = arith.constant dense<0.000000e+00> : vector<2x8xf32>
    %14 = vector.multi_reduction <add>, %13, %cst_9 [2] : vector<2x8x64xf32> to vector<2x8xf32>
    %c0_10 = arith.constant 0 : index
    %c0_11 = arith.constant 0 : index
    %15 = vector.load %arg5[%c0_10, %c0_11] : memref<2x8xf32, #tpu.memory_space<vmem>>, vector<2x8xf32>
    tpu.vector_store %arg5[%c0_10, %c0_11], %14 {strides = array<i32>} : memref<2x8xf32, #tpu.memory_space<vmem>>, vector<2x8xf32>,
    return
  }
  func.func @transform_0(%arg0: i32) -> (i32, i32, i32) {
    %c0_i32 = arith.constant 0 : i32
    %c0_i32_0 = arith.constant 0 : i32
    %c0_i32_1 = arith.constant 0 : i32
    return %arg0, %c0_i32, %c0_i32_0 : i32, i32, i32
  }
  func.func @transform_1(%arg0: i32) -> (i32, i32) {
    %c0_i32 = arith.constant 0 : i32
    %c0_i32_0 = arith.constant 0 : i32
    %c0_i32_1 = arith.constant 0 : i32
    return %c0_i32, %c0_i32_0 : i32, i32
  }
  func.func @transform_2(%arg0: i32) -> (i32, i32) {
    %c0_i32 = arith.constant 0 : i32
    %c0_i32_0 = arith.constant 0 : i32
    %c0_i32_1 = arith.constant 0 : i32
    return %c0_i32, %c0_i32_0 : i32, i32
  }
  func.func @transform_3(%arg0: i32) -> (i32, i32) {
    %c0_i32 = arith.constant 0 : i32
    %c0_i32_0 = arith.constant 0 : i32
    %c0_i32_1 = arith.constant 0 : i32
    return %c0_i32, %c0_i32_0 : i32, i32
  }
  func.func @transform_4(%arg0: i32) -> (i32, i32) {
    %c0_i32 = arith.constant 0 : i32
    %c0_i32_0 = arith.constant 0 : i32
    return %arg0, %c0_i32 : i32, i32
  }
}

</mosaic_0001>

<llo_original>
// kernel: tpu_custom_call.1
$region0: #{tpu_custom_call.1}
  #allocation0 [shape = 'u32[]', space=smem, size = 0x4, offset = 0x4, fixed_abs, tag = 'smem constant byte address 0x4 - core index']
  #allocation1 [shape = 'u32[72,128]{1,0:T(1,128)}', space=vmem, size = 0x9000, scoped, tag = 'internal scratch']
  %s0 = inlined_call_operand.hbm [shape: bf16[2,8,32], index: 0, kind: input, shape index: {}]
  %s1 = inlined_call_operand.hbm [shape: bf16[32,64], index: 1, kind: input, shape index: {}]
  %s2 = inlined_call_operand.vmem [shape: f32[1,64], index: 2, kind: input, shape index: {}]
  %s3 = inlined_call_operand.vmem [shape: f32[1,64], index: 3, kind: input, shape index: {}]
  %s4 = inlined_call_operand.hbm [shape: f32[2,8], index: 4, kind: output, shape index: {}]
  %s5 = sld [smem:[#allocation0]]
  $region34: #{tpu_custom_call.1} parent=0
    _
  %s7 = ssub.s32 1, %s5
  %s8 = scalar_select 0, %s7, %s5
  $region1: #{tpu_custom_call.1} parent=0
    #allocation2 [shape = 'u8[4096]{0}', space=vmem, size = 0x1000, scoped, tag = 'input window, operand 0, single buffered']
    #allocation3 [shape = 's32[1]{0}', space=sflag, size = 0x4, scoped, tag = 'scoped memory for tpu_custom_call.1']
    #allocation4 [shape = 's32[1]{0}', space=sflag, size = 0x4, scoped, tag = 'scoped memory for tpu_custom_call.1']
    #allocation5 [shape = 'u8[8192]{0}', space=vmem, size = 0x2000, scoped, tag = 'input window, operand 1, single buffered']
    #allocation6 [shape = 's32[1]{0}', space=sflag, size = 0x4, scoped, tag = 'scoped memory for tpu_custom_call.1']
    #allocation7 [shape = 'u8[1024]{0}', space=vmem, size = 0x400, scoped, tag = 'output window, operand 0, single buffered']
    %9 = vsyncpa [#allocation3], 0
    %10 = vsyncpa [#allocation6], 0
    %11 = vsyncpa [#allocation4], 0
    // Predicated region
    $region2: #{tpu_custom_call.1} parent=1 // pred_check
      _
    $region3: #{tpu_custom_call.1} parent=1 // pred_check_branch
      %13 = sbr.rel (0) target = $region5
    $region4: #{tpu_custom_call.1} parent=1 // pred_region
      %15 = vsyncadd [#allocation3], 0
      %s16 = sshll.u32 %s0, 4
      %s17 = int_to_ptr.hbm [resolvable:$true] %s16
      %s18 = sshll.u32 [#allocation2], 4
      %s19 = int_to_ptr.vmem [resolvable:$true] %s18
      %24 = dma.hbm_to_vmem [thread:$0]  %s17, 128, %s19, [#allocation3], 64, 64, 4
    $region5: #{tpu_custom_call.1} parent=1 // pred_fallthru
      _
    // Predicated region
    $region6: #{tpu_custom_call.1} parent=1 // pred_check
      _
    $region7: #{tpu_custom_call.1} parent=1 // pred_check_branch
      %26 = sbr.rel (0) target = $region9
    $region8: #{tpu_custom_call.1} parent=1 // pred_region
      %28 = vsyncadd [#allocation6], 0
      %s29 = sshll.u32 %s1, 4
      %s30 = int_to_ptr.hbm [resolvable:$true] %s29
      %s31 = sshll.u32 [#allocation5], 4
      %s32 = int_to_ptr.vmem [resolvable:$true] %s31
      %37 = dma.hbm_to_vmem [thread:$0]  %s30, 256, %s32, [#allocation6], 64, 64, 4
    $region9: #{tpu_custom_call.1} parent=1 // pred_fallthru
      _
    // Predicated region
    $region10: #{tpu_custom_call.1} parent=1 // pred_check
      _
    $region11: #{tpu_custom_call.1} parent=1 // pred_check_branch
      %39 = sbr.rel (0) target = $region13
    $region12: #{tpu_custom_call.1} parent=1 // pred_region
      _
    $region13: #{tpu_custom_call.1} parent=1 // pred_fallthru
      _
    // Predicated region
    $region14: #{tpu_custom_call.1} parent=1 // pred_check
      _
    $region15: #{tpu_custom_call.1} parent=1 // pred_check_branch
      %41 = sbr.rel (0) target = $region17
    $region16: #{tpu_custom_call.1} parent=1 // pred_region
      _
    $region17: #{tpu_custom_call.1} parent=1 // pred_fallthru
      _
    // Predicated region
    $region18: #{tpu_custom_call.1} parent=1 // pred_check
      _
    $region19: #{tpu_custom_call.1} parent=1 // pred_check_branch
      %43 = sbr.rel (0) target = $region21
    $region20: #{tpu_custom_call.1} parent=1 // pred_region
      %45 = dma.done [#allocation3], 128
    $region21: #{tpu_custom_call.1} parent=1 // pred_fallthru
      _
    // Predicated region
    $region22: #{tpu_custom_call.1} parent=1 // pred_check
      _
    $region23: #{tpu_custom_call.1} parent=1 // pred_check_branch
      %47 = sbr.rel (0) target = $region25
    $region24: #{tpu_custom_call.1} parent=1 // pred_region
      %49 = dma.done [#allocation6], 256
    $region25: #{tpu_custom_call.1} parent=1 // pred_fallthru
      _
    %v51 = vld [vmem:[#allocation2] sm:$0xf]
    %v52 = vld [vmem:[#allocation2 + $0x4] sm:$0xf]
    %v53 = vld [vmem:[#allocation5] sm:$0xf]
    %v54 = vld [vmem:[#allocation5 + $0x4] sm:$0xf]
    %v55 = vld [vmem:[#allocation5 + $0x8] sm:$0xf]
    %v56 = vld [vmem:[#allocation5 + $0xc] sm:$0xf]
    %v57 = vld [vmem:[%s2] sm:$0x1]
    %v59 = vperm.slane %v57, 0
    %v63 = vunpack.c.l.b16 %v51
    %v64 = vunpack.c.l.b16 %v52
    %v65 = vpack.c.b16 %v64, %v63
    %v70 = vunpack.c.l.b16 %v53
    %v71 = vunpack.c.l.b16 %v54
    %v72 = vunpack.c.l.b16 %v55
    %v73 = vunpack.c.l.b16 %v56
    %v74 = vpack.c.b16 %v71, %v70
    %v75 = vpack.c.b16 %v73, %v72
    %vm78 = vcmask 261120
    %v80 = vsel %vm78, %v65, 0
    %82 = vmatpush.bf16.msra.mxu0 0
    %83 = vmatpush.bf16.msra.mxu0 0
    %84 = vmatpush.bf16.msra.mxu0 0
    %85 = vmatpush.bf16.msra.mxu0 0
    %86 = vmatpush.bf16.msra.mxu0 0
    %87 = vmatpush.bf16.msra.mxu0 0
    %88 = vmatpush.bf16.msra.mxu0 %v75
    %89 = vmatpush.bf16.msra.mxu0 %v74
    %90 = vmatmul.bf16.gmra.mxu0 %v80
    %v91 = vpop.f32.mrf.mxu0
    %v92 = vadd.f32 %v59, %v91
    %v93 = vpop.f32.mrf.mxu0
    %v94 = vadd.f32 %v59, %v93
    %95 = vdwg.mxu0
    %v96 = vmax.f32 %v92, 0.0
    %v97 = vmax.f32 %v94, 0.0
    %v98 = vld [vmem:[%s3] sm:$0x1]
    %v100 = vperm.slane %v98, 0
    %v102 = vmul.f32 %v96, %v100
    %v103 = vmul.f32 %v97, %v100
    %vm104 = vcmask 523264
    %v105 = vsel %vm104, %v102, 0.0
    %106 = vadd.xlane.f32.xlu0 %v105
    %v107 = vpop.xlane.xlu0 %106
    %v108 = vsel %vm104, %v103, 0.0
    %109 = vadd.xlane.f32.xlu0 %v108
    %v110 = vpop.xlane.xlu0 %109
    %v113 = vlaneseq
    %v114 = vand.u32 %v113, 127
    %v115 = vperm.slane %v107, %v114
    %v116 = vperm.slane %v110, %v114
    %vm117 = vcmask 1041409
    %v118 = vsel %vm117, %v116, %v115
    %vm120 = vcmask 58368
    %121 = vst.msk [vmem:[#allocation7] sm:$0x3] %vm120, %v118
    // Predicated region
    $region26: #{tpu_custom_call.1} parent=1 // pred_check
      _
    $region27: #{tpu_custom_call.1} parent=1 // pred_check_branch
      %123 = sbr.rel (0) target = $region29
    $region28: #{tpu_custom_call.1} parent=1 // pred_region
      %125 = vsyncadd [#allocation4], 0
      %s127 = sshll.u32 [#allocation7], 4
      %s128 = int_to_ptr.vmem [resolvable:$true] %s127
      %s129 = sshll.u32 %s4, 4
      %s130 = int_to_ptr.hbm [resolvable:$true] %s129
      %132 = dma.vmem_to_hbm [thread:$0]  %s128, 32, %s130, [#allocation4]
    $region29: #{tpu_custom_call.1} parent=1 // pred_fallthru
      _
    // Predicated region
    $region30: #{tpu_custom_call.1} parent=1 // pred_check
      _
    $region31: #{tpu_custom_call.1} parent=1 // pred_check_branch
      %134 = sbr.rel (0) target = $region33
    $region32: #{tpu_custom_call.1} parent=1 // pred_region
      %136 = dma.done [#allocation4], 32
    $region33: #{tpu_custom_call.1} parent=1 // pred_fallthru
      _
    %137 = vsyncpa [#allocation3], 1
    %138 = vsyncpa [#allocation6], 1
    %139 = vsyncpa [#allocation4], 1

</llo_original>
